<compile_context>
chip_gen: v7x
topology: tpu7x:2x2x1
jax: 0.10.0
libtpu: 0.0.40
codegen_flags: <defaults>
</compile_context>

<pallas_src>
import math
import functools

import jax
import jax.numpy as jnp
from jax import lax
from jax.experimental import pallas as pl
from jax.experimental.pallas import tpu as pltpu


_VMEM_LIMIT_BYTES = 32 * 1024 * 1024   # explicit, safe on v5e/v6e/v7x


def _pick_tile(dim, pref, min_tile=128):
    """Largest power-of-two tile <= pref (>= min_tile) dividing dim, else full dim."""
    t = pref
    while t >= min_tile:
        if dim % t == 0:
            return t
        t //= 2
    # TODO(synk): pad large non-divisible dims to a tile multiple instead of
    # falling back to one full block (fine for the small demo shapes here).
    return dim


# ---------------------------------------------------------------------------
# Tiled linear (x @ w.T + b) kernel — weights arrive pre-transposed [K, N] bf16
# ---------------------------------------------------------------------------

def matmul_bias_kernel(x_ref, wt_ref, b_ref, o_ref, acc_ref):
    kk = pl.program_id(2)

    @pl.when(kk == 0)
    def _():
        acc_ref[...] = jnp.zeros_like(acc_ref)

    acc_ref[...] += jnp.dot(x_ref[...], wt_ref[...],
                            preferred_element_type=jnp.float32)

    @pl.when(kk == pl.num_programs(2) - 1)
    def _():
        o_ref[...] = (acc_ref[...] + b_ref[...]).astype(o_ref.dtype)


def pallas_linear(x, wt, b, *, tm=256, tn=256, tk=512):
    """x: [M, K] bf16 ; wt: [K, N] bf16 (pre-transposed) ; b: [1, N] f32 -> [M, N] bf16."""
    M, K = x.shape
    N = wt.shape[1]
    tm = _pick_tile(M, tm)
    tn = _pick_tile(N, tn)
    tk = _pick_tile(K, tk)

    return pl.pallas_call(
        matmul_bias_kernel,
        out_shape=jax.ShapeDtypeStruct((M, N), jnp.bfloat16),
        grid_spec=pltpu.PrefetchScalarGridSpec(
            num_scalar_prefetch=0,
            grid=(M // tm, N // tn, K // tk),
            in_specs=[
                pl.BlockSpec((tm, tk), lambda i, j, kk: (i, kk)),
                pl.BlockSpec((tk, tn), lambda i, j, kk: (kk, j)),
                pl.BlockSpec((1, tn), lambda i, j, kk: (0, j)),
            ],
            out_specs=pl.BlockSpec((tm, tn), lambda i, j, kk: (i, j)),
            scratch_shapes=[pltpu.VMEM((tm, tn), jnp.float32)],
        ),
        compiler_params=pltpu.CompilerParams(
            dimension_semantics=("parallel", "parallel", "arbitrary"),
            vmem_limit_bytes=_VMEM_LIMIT_BYTES),
    )(x, wt, b)


# ---------------------------------------------------------------------------
# Flash-attention style kernel (online softmax over KV tiles, masked-tile skip)
# ---------------------------------------------------------------------------

def flash_attn_kernel(kv_upper_ref, q_ref, kT_ref, v_ref, mask_ref, o_ref,
                      m_sc, l_sc, acc_sc, *, nh, mask_value):
    bh = pl.program_id(0)
    qi = pl.program_id(1)
    ki = pl.program_id(2)
    kv_upper = kv_upper_ref[bh // nh, qi]        # number of live KV tiles (>= 1)

    @pl.when(ki == 0)
    def _():
        m_sc[...] = jnp.full_like(m_sc, -jnp.inf)
        l_sc[...] = jnp.zeros_like(l_sc)
        acc_sc[...] = jnp.zeros_like(acc_sc)

    @pl.when(ki < kv_upper)
    def _():
        q = q_ref[0]          # [tq, D] bf16 (already scaled by 1/sqrt(D))
        kT = kT_ref[0]        # [D, tk] bf16 (K pre-transposed)
        v = v_ref[0]          # [tk, D] bf16
        mask = mask_ref[0]    # [tq, tk] int8 (nonzero == masked)

        s = jnp.dot(q, kT, preferred_element_type=jnp.float32)
        s = jnp.where(mask != 0, mask_value, s)

        m_prev = m_sc[...]
        m_new = jnp.maximum(m_prev, jnp.max(s, axis=-1, keepdims=True))
        alpha = jnp.exp(m_prev - m_new)
        p = jnp.exp(s - m_new)
        l_sc[...] = alpha * l_sc[...] + jnp.sum(p, axis=-1, keepdims=True)
        acc_sc[...] = alpha * acc_sc[...] + jnp.dot(
            p.astype(v.dtype), v, preferred_element_type=jnp.float32)
        m_sc[...] = m_new

    @pl.when(ki == pl.num_programs(2) - 1)
    def _():
        o_ref[0] = (acc_sc[...] *
                    pl.reciprocal(l_sc[...], approx=False)).astype(o_ref.dtype)


def pallas_flash_attention(q, kT, v, mask_i8, *, nh, mask_value, tq=256, tk=256):
    """q/v: [B*NH, S, D] bf16 ; kT: [B*NH, D, S] bf16 ; mask: [B, S, S] int8
       -> [B*NH, S, D] bf16."""
    BH, S, D = q.shape
    B = BH // nh
    tq = _pick_tile(S, tq)
    tk = _pick_tile(S, tk)
    nq, nk = S // tq, S // tk

    # Per-(batch, q-tile) number of KV tiles containing at least one unmasked
    # element (clamped to >= 1).  Scalar-prefetched so index_maps can skip the
    # DMA of fully-masked KV tiles and pl.when skips their compute.
    unmasked = (mask_i8 == 0).reshape(B, nq, tq, nk, tk)
    tile_live = jnp.any(unmasked, axis=(2, 4))                        # [B, nq, nk]
    last_live = jnp.max(
        jnp.where(tile_live, jnp.arange(nk, dtype=jnp.int32) + 1, 0), axis=-1)
    kv_upper = jnp.maximum(last_live, 1).astype(jnp.int32)            # [B, nq]

    def _clamped_ki(bh, qi, ki, kvu):
        return jnp.minimum(ki, kvu[bh // nh, qi] - 1)

    q_spec = pl.BlockSpec((1, tq, D), lambda bh, qi, ki, kvu: (bh, qi, 0))
    k_spec = pl.BlockSpec((1, D, tk),
                          lambda bh, qi, ki, kvu: (bh, 0, _clamped_ki(bh, qi, ki, kvu)))
    v_spec = pl.BlockSpec((1, tk, D),
                          lambda bh, qi, ki, kvu: (bh, _clamped_ki(bh, qi, ki, kvu), 0))
    m_spec = pl.BlockSpec((1, tq, tk),
                          lambda bh, qi, ki, kvu: (bh // nh, qi,
                                                   _clamped_ki(bh, qi, ki, kvu)))
    o_spec = pl.BlockSpec((1, tq, D), lambda bh, qi, ki, kvu: (bh, qi, 0))

    kernel = functools.partial(flash_attn_kernel, nh=nh, mask_value=mask_value)
    return pl.pallas_call(
        kernel,
        out_shape=jax.ShapeDtypeStruct((BH, S, D), jnp.bfloat16),
        grid_spec=pltpu.PrefetchScalarGridSpec(
            num_scalar_prefetch=1,
            grid=(BH, nq, nk),
            in_specs=[q_spec, k_spec, v_spec, m_spec],
            out_specs=o_spec,
            scratch_shapes=[
                pltpu.VMEM((tq, 1), jnp.float32),   # running max
                pltpu.VMEM((tq, 1), jnp.float32),   # running denom
                pltpu.VMEM((tq, D), jnp.float32),   # output accumulator
            ],
        ),
        compiler_params=pltpu.CompilerParams(
            dimension_semantics=("parallel", "parallel", "arbitrary"),
            vmem_limit_bytes=_VMEM_LIMIT_BYTES),
    )(kv_upper, q, kT, v, mask_i8)


# ---------------------------------------------------------------------------
# Forward pass (rotary / layout glue in plain JAX, matmuls+attention in Pallas)
# ---------------------------------------------------------------------------

def prepare_params(raw):
    """One-time weight prep: transpose to [K, N] and cast to bf16 (hoisted out
    of the forward path so no per-call weight HBM transpose/cast passes)."""
    return {
        "wt_qkv": jnp.asarray(raw["w_qkv"]).T.astype(jnp.bfloat16),      # [H, 3*inner]
        "b_qkv": jnp.asarray(raw["b_qkv"]).reshape(1, -1).astype(jnp.float32),
        "wt_dense": jnp.asarray(raw["w_dense"]).T.astype(jnp.bfloat16),  # [inner, H]
        "b_dense": jnp.asarray(raw["b_dense"]).reshape(1, -1).astype(jnp.float32),
    }


def _rotate_half(x):
    h = x.shape[-1] // 2
    return jnp.concatenate([-x[..., h:], x[..., :h]], axis=-1)


def self_attention_forward(hidden_states, position_ids, attention_mask, params,
                           *, layer_id, num_heads, rotary_base=10000.0):
    S, B, H = hidden_states.shape
    NH = num_heads
    HD = H // NH                  # hidden_size_per_attention_head
    inner = NH * HD               # inner_hidden_size == hidden_size here
    rot_dim = HD // 2             # 2D rotary: hidden // (heads * 2)

    x = hidden_states.astype(jnp.bfloat16)

    # --- QKV projection (tiled Pallas matmul, bf16 MXU / f32 accumulate) ---
    mixed = pallas_linear(x.reshape(S * B, H), params["wt_qkv"], params["b_qkv"])
    mixed = mixed.reshape(S, B, NH, 3 * HD)
    q, k, v = jnp.split(mixed, 3, axis=-1)                             # [S, B, NH, HD]

    # --- 2D rotary position embedding (plain JAX; fuses with the split) ---
    q1, q2 = q[..., :rot_dim], q[..., rot_dim:]
    k1, k2 = k[..., :rot_dim], k[..., rot_dim:]

    pos = jnp.transpose(position_ids[:, 0, :], (1, 0))        # [S, B]
    block_pos = jnp.transpose(position_ids[:, 1, :], (1, 0))  # [S, B]

    inv_freq = 1.0 / (rotary_base ** (
        jnp.arange(0, rot_dim, 2, dtype=jnp.float32) / rot_dim))       # [rot_dim/2]

    def cos_sin(ids):
        freqs = ids.astype(jnp.float32)[..., None] * inv_freq          # [S, B, rd/2]
        emb = jnp.concatenate([freqs, freqs], axis=-1)                 # [S, B, rd]
        return jnp.cos(emb)[:, :, None, :], jnp.sin(emb)[:, :, None, :]

    cos1, sin1 = cos_sin(pos)
    cos2, sin2 = cos_sin(block_pos)

    def rot(x_, c, s):
        return x_ * c + _rotate_half(x_) * s

    q = jnp.concatenate([rot(q1, cos1, sin1), rot(q2, cos2, sin2)], axis=-1)  # f32
    k = jnp.concatenate([rot(k1, cos1, sin1), rot(k2, cos2, sin2)], axis=-1)  # f32

    # --- attention (Pallas flash-style kernel) ---
    coeff = float(layer_id + 1)
    sm_scale = 1.0 / math.sqrt(HD)          # /(sqrt(d)*coeff) ... *coeff folds away
    mask_value = -10000.0 * coeff           # matches masked_fill(-10000) * coeff

    # Heads-first layouts, bf16; 1/sqrt(d) folded into q once here.
    qh = jnp.transpose(q * sm_scale, (1, 2, 0, 3)).reshape(B * NH, S, HD) \
            .astype(jnp.bfloat16)
    kT = jnp.transpose(k, (1, 2, 3, 0)).reshape(B * NH, HD, S).astype(jnp.bfloat16)
    vh = jnp.transpose(v, (1, 2, 0, 3)).reshape(B * NH, S, HD).astype(jnp.bfloat16)
    # TODO(synk): fold these head reshuffles into the attention BlockSpecs
    #             (read directly from [S, B, NH, HD]) to drop the XLA transposes.

    mask_i8 = (attention_mask.reshape(B, S, S) != 0).astype(jnp.int8)

    ctx = pallas_flash_attention(qh, kT, vh, mask_i8, nh=NH, mask_value=mask_value)

    # [B*NH, S, HD] -> [S, B, inner]
    ctx = jnp.transpose(ctx.reshape(B, NH, S, HD), (2, 0, 1, 3)).reshape(S, B, inner)

    # --- output projection (tiled Pallas matmul) ---
    out = pallas_linear(ctx.reshape(S * B, inner),
                        params["wt_dense"], params["b_dense"]).reshape(S, B, H)

    # TODO(synk): layer_past concat / use_cache "present" tuple and
    #             output_attentions probs not exercised (defaults None/False).
    present = None
    return out, present


# ---------------------------------------------------------------------------
# Main
# ---------------------------------------------------------------------------

if __name__ == "__main__":
    S, B, H, NH = 8, 2, 32, 4        # seq, batch, hidden, heads (head_dim = 8)
    layer_id = 1

    key = jax.random.PRNGKey(0)
    k1, k2, k3, k4, k5 = jax.random.split(key, 5)

    hidden_states = jax.random.normal(k1, (S, B, H), jnp.float32)
    raw_params = {
        "w_qkv":   0.02 * jax.random.normal(k2, (3 * H, H), jnp.float32),
        "b_qkv":   0.02 * jax.random.normal(k3, (3 * H,), jnp.float32),
        "w_dense": 0.02 * jax.random.normal(k4, (H, H), jnp.float32),
        "b_dense": 0.02 * jax.random.normal(k5, (H,), jnp.float32),
    }
    params = prepare_params(raw_params)   # one-time transpose + bf16 cast

    # position_ids: [batch, 2, seq]  (row 0: positions, row 1: block positions)
    pos = jnp.broadcast_to(jnp.arange(S, dtype=jnp.int32), (B, S))
    block = jnp.broadcast_to(
        jnp.concatenate([jnp.zeros(S - 2, jnp.int32),
                         jnp.arange(1, 3, dtype=jnp.int32)]), (B, S))
    position_ids = jnp.stack([pos, block], axis=1)            # [B, 2, S]

    # attention_mask: [batch, 1, seq, seq], 1.0 (True) == masked (causal upper tri)
    causal = jnp.triu(jnp.ones((S, S), jnp.float32), k=1)
    attention_mask = jnp.broadcast_to(causal, (B, 1, S, S))

    out, _present = self_attention_forward(
        hidden_states, position_ids, attention_mask, params,
        layer_id=layer_id, num_heads=NH)
    jax.block_until_ready(out)
    assert out.shape == (S, B, H)
    print("KERNEL_OK")
</pallas_src>

<mosaic_0001>
module attributes {stable_mosaic.version = 11 : i64} {
  func.func @matmul_bias_kernel(%arg0: i32, %arg1: i32, %arg2: i32, %arg3: memref<16x32xbf16, #tpu.memory_space<vmem>>, %arg4: memref<32x96xbf16, #tpu.memory_space<vmem>>, %arg5: memref<1x96xf32, #tpu.memory_space<vmem>>, %arg6: memref<16x96xbf16, #tpu.memory_space<vmem>>, %arg7: memref<16x96xf32, #tpu.memory_space<vmem>>) attributes {dimension_semantics = [#tpu.dimension_semantics<parallel>, #tpu.dimension_semantics<parallel>, #tpu.dimension_semantics<arbitrary>], iteration_bounds = array<i64: 1, 1, 1>, scalar_prefetch = 0 : i64, scratch_operands = 1 : i64, tpu.core_type = #tpu.core_type<tc>, window_params = [{transform_indices = @transform_0, window_bounds = array<i64: 16, 32>}, {transform_indices = @transform_1, window_bounds = array<i64: 32, 96>}, {transform_indices = @transform_2, window_bounds = array<i64: 1, 96>}, {transform_indices = @transform_3, window_bounds = array<i64: 16, 96>}]} {
    %c0_i32 = arith.constant 0 : i32
    %0 = arith.cmpi eq, %arg2, %c0_i32 : i32
    %1 = arith.extui %0 : i1 to i32
    %c0_i32_0 = arith.constant 0 : i32
    %2 = arith.cmpi ne, %1, %c0_i32_0 : i32
    scf.if %2 {
      %cst_10 = arith.constant 0.000000e+00 : f32
      %12 = vector.broadcast %cst_10 : f32 to vector<16x96xf32>
      %c0_11 = arith.constant 0 : index
      %c0_12 = arith.constant 0 : index
      %13 = vector.load %arg7[%c0_11, %c0_12] : memref<16x96xf32, #tpu.memory_space<vmem>>, vector<16x96xf32>
      tpu.vector_store %arg7[%c0_11, %c0_12], %12 {strides = array<i32>} : memref<16x96xf32, #tpu.memory_space<vmem>>, vector<16x96xf32>,
    } else {
    }
    %c0 = arith.constant 0 : index
    %c0_1 = arith.constant 0 : index
    %3 = vector.load %arg7[%c0, %c0_1] : memref<16x96xf32, #tpu.memory_space<vmem>>, vector<16x96xf32>
    %c0_2 = arith.constant 0 : index
    %c0_3 = arith.constant 0 : index
    %4 = vector.load %arg3[%c0_2, %c0_3] : memref<16x32xbf16, #tpu.memory_space<vmem>>, vector<16x32xbf16>
    %c0_4 = arith.constant 0 : index
    %c0_5 = arith.constant 0 : index
    %5 = vector.load %arg4[%c0_4, %c0_5] : memref<32x96xbf16, #tpu.memory_space<vmem>>, vector<32x96xbf16>
    %cst = arith.constant dense<0.000000e+00> : vector<16x96xf32>
    %6 = tpu.matmul %4, %5, %cst {dimension_numbers = #tpu.dot_dimension_numbers<[1], [0], [0], [1], [0, 0, 1, 1], [], []>} : vector<16x32xbf16>, vector<32x96xbf16>, vector<16x96xf32> -> vector<16x96xf32>
    %7 = arith.addf %3, %6 : vector<16x96xf32>
    %c0_6 = arith.constant 0 : index
    %c0_7 = arith.constant 0 : index
    %8 = vector.load %arg7[%c0_6, %c0_7] : memref<16x96xf32, #tpu.memory_space<vmem>>, vector<16x96xf32>
    tpu.vector_store %arg7[%c0_6, %c0_7], %7 {strides = array<i32>} : memref<16x96xf32, #tpu.memory_space<vmem>>, vector<16x96xf32>,
    %c0_i32_8 = arith.constant 0 : i32
    %9 = arith.cmpi eq, %arg2, %c0_i32_8 : i32
    %10 = arith.extui %9 : i1 to i32
    %c0_i32_9 = arith.constant 0 : i32
    %11 = arith.cmpi ne, %10, %c0_i32_9 : i32
    scf.if %11 {
      %c0_10 = arith.constant 0 : index
      %c0_11 = arith.constant 0 : index
      %12 = vector.load %arg7[%c0_10, %c0_11] : memref<16x96xf32, #tpu.memory_space<vmem>>, vector<16x96xf32>
      %c0_12 = arith.constant 0 : index
      %c0_13 = arith.constant 0 : index
      %13 = vector.load %arg5[%c0_12, %c0_13] : memref<1x96xf32, #tpu.memory_space<vmem>>, vector<1x96xf32>
      %14 = vector.broadcast %13 : vector<1x96xf32> to vector<16x96xf32>
      %15 = arith.addf %12, %14 : vector<16x96xf32>
      %16 = arith.truncf %15 : vector<16x96xf32> to vector<16x96xbf16>
      %c0_14 = arith.constant 0 : index
      %c0_15 = arith.constant 0 : index
      %17 = vector.load %arg6[%c0_14, %c0_15] : memref<16x96xbf16, #tpu.memory_space<vmem>>, vector<16x96xbf16>
      tpu.vector_store %arg6[%c0_14, %c0_15], %16 {strides = array<i32>} : memref<16x96xbf16, #tpu.memory_space<vmem>>, vector<16x96xbf16>,
    } else {
    }
    return
  }
  func.func @transform_0(%arg0: i32, %arg1: i32, %arg2: i32) -> (i32, i32) {
    %c0_i32 = arith.constant 0 : i32
    return %arg0, %arg2 : i32, i32
  }
  func.func @transform_1(%arg0: i32, %arg1: i32, %arg2: i32) -> (i32, i32) {
    %c0_i32 = arith.constant 0 : i32
    return %arg2, %arg1 : i32, i32
  }
  func.func @transform_2(%arg0: i32, %arg1: i32, %arg2: i32) -> (i32, i32) {
    %c0_i32 = arith.constant 0 : i32
    %c0_i32_0 = arith.constant 0 : i32
    return %c0_i32, %arg1 : i32, i32
  }
  func.func @transform_3(%arg0: i32, %arg1: i32, %arg2: i32) -> (i32, i32) {
    %c0_i32 = arith.constant 0 : i32
    return %arg0, %arg1 : i32, i32
  }
}

</mosaic_0001>

<llo_original>
// kernel: tpu_custom_call.1
$region0: #{tpu_custom_call.1}
  #allocation0 [shape = 'u32[]', space=smem, size = 0x4, offset = 0x4, fixed_abs, tag = 'smem constant byte address 0x4 - core index']
  #allocation1 [shape = 'u32[144,128]{1,0:T(1,128)}', space=vmem, size = 0x12000, scoped, tag = 'internal scratch']
  #allocation2 [shape = 'f32[16,96]{1,0:T(8,128)}', space=vmem, size = 0x2000, scoped, tag = 'scratch operand']
  %s0 = inlined_call_operand.hbm [shape: bf16[16,32], index: 0, kind: input, shape index: {}]
  %s1 = inlined_call_operand.hbm [shape: bf16[32,96], index: 1, kind: input, shape index: {}]
  %s2 = inlined_call_operand.vmem [shape: f32[1,96], index: 2, kind: input, shape index: {}]
  %s3 = inlined_call_operand.hbm [shape: bf16[16,96], index: 3, kind: output, shape index: {}]
  %s4 = sld [smem:[#allocation0]]
  $region38: #{tpu_custom_call.1} parent=0
    _
  %s6 = ssub.s32 1, %s4
  %s7 = scalar_select 0, %s6, %s4
  $region1: #{tpu_custom_call.1} parent=0
    #allocation3 [shape = 'u8[4096]{0}', space=vmem, size = 0x1000, scoped, tag = 'input window, operand 0, single buffered']
    #allocation4 [shape = 's32[1]{0}', space=sflag, size = 0x4, scoped, tag = 'scoped memory for tpu_custom_call.1']
    #allocation5 [shape = 's32[1]{0}', space=sflag, size = 0x4, scoped, tag = 'scoped memory for tpu_custom_call.1']
    #allocation6 [shape = 'u8[8192]{0}', space=vmem, size = 0x2000, scoped, tag = 'input window, operand 1, single buffered']
    #allocation7 [shape = 's32[1]{0}', space=sflag, size = 0x4, scoped, tag = 'scoped memory for tpu_custom_call.1']
    #allocation8 [shape = 'u8[4096]{0}', space=vmem, size = 0x1000, scoped, tag = 'output window, operand 0, single buffered']
    %8 = vsyncpa [#allocation4], 0
    %9 = vsyncpa [#allocation7], 0
    %10 = vsyncpa [#allocation5], 0
    // Predicated region
    $region2: #{tpu_custom_call.1} parent=1 // pred_check
      _
    $region3: #{tpu_custom_call.1} parent=1 // pred_check_branch
      %12 = sbr.rel (0) target = $region5
    $region4: #{tpu_custom_call.1} parent=1 // pred_region
      %s14 = ssub.s32 128, 128
      %15 = vsyncadd [#allocation4], %s14
      %s16 = sshll.u32 [#allocation3], 4
      %s17 = int_to_ptr.vmem [resolvable:$true] %s16
      %22 = dma.hbm_to_vmem [thread:$0]  %s0, 128, %s17, [#allocation4], 64, 64, 4
    $region5: #{tpu_custom_call.1} parent=1 // pred_fallthru
      _
    // Predicated region
    $region6: #{tpu_custom_call.1} parent=1 // pred_check
      _
    $region7: #{tpu_custom_call.1} parent=1 // pred_check_branch
      %24 = sbr.rel (0) target = $region9
    $region8: #{tpu_custom_call.1} parent=1 // pred_region
      %s26 = ssub.s32 256, 256
      %27 = vsyncadd [#allocation7], %s26
      %s28 = sshll.u32 [#allocation6], 4
      %s29 = int_to_ptr.vmem [resolvable:$true] %s28
      %34 = dma.hbm_to_vmem [thread:$0]  %s1, 256, %s29, [#allocation7], 64, 64, 4
    $region9: #{tpu_custom_call.1} parent=1 // pred_fallthru
      _
    // Predicated region
    $region10: #{tpu_custom_call.1} parent=1 // pred_check
      _
    $region11: #{tpu_custom_call.1} parent=1 // pred_check_branch
      %36 = sbr.rel (0) target = $region13
    $region12: #{tpu_custom_call.1} parent=1 // pred_region
      _
    $region13: #{tpu_custom_call.1} parent=1 // pred_fallthru
      _
    // Predicated region
    $region14: #{tpu_custom_call.1} parent=1 // pred_check
      _
    $region15: #{tpu_custom_call.1} parent=1 // pred_check_branch
      %38 = sbr.rel (0) target = $region17
    $region16: #{tpu_custom_call.1} parent=1 // pred_region
      %39 = dma.done [#allocation4], 128
    $region17: #{tpu_custom_call.1} parent=1 // pred_fallthru
      _
    // Predicated region
    $region18: #{tpu_custom_call.1} parent=1 // pred_check
      _
    $region19: #{tpu_custom_call.1} parent=1 // pred_check_branch
      %41 = sbr.rel (0) target = $region21
    $region20: #{tpu_custom_call.1} parent=1 // pred_region
      %42 = dma.done [#allocation7], 256
    $region21: #{tpu_custom_call.1} parent=1 // pred_fallthru
      _
    %p44 = scmp.eq.s32.totalorder 0, 0
    // Predicated region
    $region22: #{tpu_custom_call.1} parent=1 // pred_check
      %p45 = pneg %p44
    $region23: #{tpu_custom_call.1} parent=1 // pred_check_branch
      %47 = sbr.rel (%p45) target = $region25
    $region24: #{tpu_custom_call.1} parent=1 // pred_region
      %vm48 = vcmask 785408
      %49 = vst.msk [vmem:[#allocation2] sm:$0xff] %vm48, 0.0
      %50 = vst.msk [vmem:[#allocation2 + $0x8] sm:$0xff] %vm48, 0.0
    $region25: #{tpu_custom_call.1} parent=1 // pred_fallthru
      _
    %v51 = vld [vmem:[#allocation2] sm:$0xff]
    %v52 = vld [vmem:[#allocation2 + $0x8] sm:$0xff]
    %v53 = vld [vmem:[#allocation3] sm:$0xf]
    %v54 = vld [vmem:[#allocation3 + $0x4] sm:$0xf]
    %v55 = vld [vmem:[#allocation6] sm:$0xf]
    %v56 = vld [vmem:[#allocation6 + $0x4] sm:$0xf]
    %v57 = vld [vmem:[#allocation6 + $0x8] sm:$0xf]
    %v58 = vld [vmem:[#allocation6 + $0xc] sm:$0xf]
    %v61 = vunpack.c.l.b16 %v53
    %v62 = vunpack.c.l.b16 %v54
    %v63 = vpack.c.b16 %v62, %v61
    %v68 = vunpack.c.l.b16 %v55
    %v69 = vunpack.c.l.b16 %v56
    %v70 = vunpack.c.l.b16 %v57
    %v71 = vunpack.c.l.b16 %v58
    %v72 = vpack.c.b16 %v69, %v68
    %v73 = vpack.c.b16 %v71, %v70
    %vm76 = vcmask 261120
    %v78 = vsel %vm76, %v63, 0
    %80 = vmatprep.subr.bf16.mxu0 0
    %81 = vmatpush1.bf16.msra.mxu0 %v72
    %82 = vmatprep.subr.bf16.mxu0 0
    %83 = vmatpush1.bf16.msra.mxu0 %v73
    %84 = vmatprep.subr.bf16.mxu0 0
    %85 = vmatpush1.bf16.msra.mxu0 0
    %86 = vmatprep.subr.bf16.mxu0 0
    %87 = vmatpush1.bf16.msra.mxu0 0
    %88 = vmatprep.subr.bf16.mxu0 0
    %89 = vmatpush1.bf16.msra.mxu0 0
    %90 = vmatprep.subr.bf16.mxu0 0
    %91 = vmatpush1.bf16.msra.mxu0 0
    %92 = vmatprep.subr.bf16.mxu0 0
    %93 = vmatpush1.bf16.msra.mxu0 0
    %94 = vmatprep.subr.bf16.mxu0 0
    %95 = vmatpush1.bf16.msra.mxu0 0
    %96 = vmatprep.subr.bf16.mxu0 0
    %97 = vmatpush1.bf16.msra.mxu0 0
    %98 = vmatprep.subr.bf16.mxu0 0
    %99 = vmatpush1.bf16.msra.mxu0 0
    %100 = vmatprep.subr.bf16.mxu0 0
    %101 = vmatpush1.bf16.msra.mxu0 0
    %102 = vmatprep.subr.bf16.mxu0 0
    %103 = vmatpush1.bf16.msra.mxu0 0
    %104 = vmatprep.subr.bf16.mxu0 0
    %105 = vmatpush1.bf16.msra.mxu0 0
    %106 = vmatprep.subr.bf16.mxu0 0
    %107 = vmatpush1.bf16.msra.mxu0 0
    %108 = vmatprep.subr.bf16.mxu0 0
    %109 = vmatpush1.bf16.msra.mxu0 0
    %110 = vmatprep.subr.bf16.mxu0 0
    %111 = vmatpush1.bf16.msra.mxu0 0
    %112 = vmatprep.mubr.bf16.mxu0 0
    %113 = vmatmul.mubr.bf16.gmra.mrb[0].mxu0 %v78
    %v114 = vpop.f32.mrb[0].mxu0
    %v115 = vadd.f32 0.0, %v114
    %v116 = vpop.f32.mrb[0].mxu0
    %v117 = vpop.f32.mrb[0].mxu0
    %v118 = vadd.f32 0.0, %v117
    %v119 = vpop.f32.mrb[0].mxu0
    %120 = vdwg.mxu0
    %v121 = vadd.f32 %v51, %v115
    %v122 = vadd.f32 %v52, %v118
    %vm123 = vcmask 785408
    %124 = vst.msk [vmem:[#allocation2] sm:$0xff] %vm123, %v121
    %125 = vst.msk [vmem:[#allocation2 + $0x8] sm:$0xff] %vm123, %v122
    // Predicated region
    $region26: #{tpu_custom_call.1} parent=1 // pred_check
      %p126 = pneg %p44
    $region27: #{tpu_custom_call.1} parent=1 // pred_check_branch
      %128 = sbr.rel (%p126) target = $region29
    $region28: #{tpu_custom_call.1} parent=1 // pred_region
      %v129 = vld [vmem:[#allocation2] sm:$0xff]
      %v130 = vld [vmem:[#allocation2 + $0x8] sm:$0xff]
      %v131 = vld [vmem:[%s2] sm:$0x1]
      %v133 = vlaneseq
      %v134 = vshrl.u32 %v133, 7
      %v135 = vsub.s32 0, %v134
      %v136 = vrot.slane %v131, %v135
      %v138 = vadd.f32 %v129, %v136
      %v139 = vadd.f32 %v130, %v136
      %v140 = vpack.c.bf16 %v139, %v138
      %v142 = vunpack.c.l.b16 %v140
      %v143 = vunpack.c.h.b16 %v140
      %v144 = vpack.c.b16 %v142, %v142
      %v145 = vpack.c.b16 %v143, %v143
      %vm148 = vcmask 781312
      %149 = vst.msk [vmem:[#allocation8] sm:$0xf] %vm148, %v144
      %150 = vst.msk [vmem:[#allocation8 + $0x4] sm:$0xf] %vm148, %v145
    $region29: #{tpu_custom_call.1} parent=1 // pred_fallthru
      _
    // Predicated region
    $region30: #{tpu_custom_call.1} parent=1 // pred_check
      _
    $region31: #{tpu_custom_call.1} parent=1 // pred_check_branch
      %152 = sbr.rel (0) target = $region33
    $region32: #{tpu_custom_call.1} parent=1 // pred_region
      %s154 = ssub.s32 128, 128
      %155 = vsyncadd [#allocation5], %s154
      %s156 = sshll.u32 [#allocation8], 4
      %s157 = int_to_ptr.vmem [resolvable:$true] %s156
      %162 = dma.vmem_to_hbm [thread:$0]  %s157, 128, %s3, [#allocation5], 64, 64, 4
    $region33: #{tpu_custom_call.1} parent=1 // pred_fallthru
      _
    // Predicated region
    $region34: #{tpu_custom_call.1} parent=1 // pred_check
      _
    $region35: #{tpu_custom_call.1} parent=1 // pred_check_branch
      %164 = sbr.rel (0) target = $region37
    $region36: #{tpu_custom_call.1} parent=1 // pred_region
      %165 = dma.done [#allocation5], 128
    $region37: #{tpu_custom_call.1} parent=1 // pred_fallthru
      _
    %166 = vsyncpa [#allocation4], 1
    %167 = vsyncpa [#allocation7], 1
    %168 = vsyncpa [#allocation5], 1

</llo_original>
